<compile_context>
chip_gen: v6e
topology: v6e:2x2x1
jax: 0.10.0
libtpu: 0.0.40
codegen_flags: <defaults>
</compile_context>

<pallas_src>
import functools

import jax
import jax.numpy as jnp
from jax.experimental import pallas as pl
from jax.experimental.pallas import tpu as pltpu


def _round_up(x, m):
    return (x + m - 1) // m * m


def _pick_div_tile(total, requested, align):
    """Largest multiple of `align` that divides `total` and is <= `requested`.

    `total` must be a multiple of `align`. Returns `total` when it already fits
    under `requested` (no tiling along that axis).
    """
    if total <= requested:
        return total
    t = (requested // align) * align
    while t > align and total % t:
        t -= align
    return max(t, align)


def _vmem_capacity_bytes():
    # Generation-aware VMEM capacity (128 MiB on v5e/v6e, 64 MiB per TC on v7x).
    try:
        cap = getattr(pltpu.get_tpu_info(), "vmem_capacity_bytes", None)
        if cap:
            return int(cap)
    except Exception:
        pass
    return 64 << 20  # conservative fallback: v7x per-TensorCore VMEM


_VMEM_CAP = _vmem_capacity_bytes()
_VMEM_HEADROOM = 4 << 20


def _probe_single_buffer():
    """One-time probe: does pipeline_mode=pl.Buffered(1) compile & run correctly?"""
    try:
        def kern(a_ref, c_ref, o_ref):
            o_ref[...] = a_ref[...] + c_ref[...]

        f = pl.pallas_call(
            kern,
            out_shape=jax.ShapeDtypeStruct((16, 128), jnp.float32),
            grid_spec=pltpu.PrefetchScalarGridSpec(
                num_scalar_prefetch=0,
                grid=(2,),
                in_specs=[
                    pl.BlockSpec((8, 128), lambda i: (i, 0)),
                    pl.BlockSpec((8, 128), lambda i: (0, 0),
                                 pipeline_mode=pl.Buffered(1)),
                ],
                out_specs=pl.BlockSpec((8, 128), lambda i: (i, 0)),
            ),
        )
        a = jnp.arange(16 * 128, dtype=jnp.float32).reshape(16, 128)
        c = jnp.full((8, 128), 3.0, jnp.float32)
        out = jax.block_until_ready(jax.jit(f)(a, c))
        return bool(jnp.allclose(out, a + 3.0))
    except Exception:
        return False


_SINGLE_BUF_OK = _probe_single_buffer()


def _make_fused_kernel(activation):
    """Single-K-step path: no accumulator scratch, direct fused epilogue store."""
    def kernel(x_ref, w_ref, b_ref, o_ref):
        y = jnp.dot(x_ref[...], w_ref[...], preferred_element_type=jnp.float32)
        y = y + b_ref[...].astype(jnp.float32)
        if activation is not None:
            y = activation(y)  # fused epilogue: VPU/EUP slots are free here
        o_ref[...] = y.astype(o_ref.dtype)

    return kernel


def _make_acc_kernel(activation):
    """Tiled-K path: f32 VMEM accumulator with first-iteration direct assign."""
    def kernel(x_ref, w_ref, b_ref, o_ref, acc_ref):
        kk = pl.program_id(2)
        prod = jnp.dot(x_ref[...], w_ref[...], preferred_element_type=jnp.float32)

        @pl.when(kk == 0)
        def _first():
            acc_ref[...] = prod          # no zero-fill store + reload

        @pl.when(kk > 0)
        def _rest():
            acc_ref[...] += prod

        @pl.when(kk == pl.num_programs(2) - 1)
        def _finalize():
            y = acc_ref[...] + b_ref[...].astype(jnp.float32)
            if activation is not None:
                y = activation(y)
            o_ref[...] = y.astype(o_ref.dtype)

    return kernel


@functools.partial(
    jax.jit,
    static_argnames=("activation", "tm", "tn", "tk", "mxu_bf16",
                     "resident_weight_bytes"),
)
def dense_conv1d(x, weight, bias, activation=None, *, tm=512, tn=512, tk=1024,
                 mxu_bf16=False, resident_weight_bytes=None):
    """Forward of dense_Conv1D.

    Args:
      x:      [..., inputs]
      weight: [inputs, outputs]
      bias:   [outputs]
    Returns:
      [..., outputs]  (activation applied inside the kernel if given)
    """
    *lead, k = x.shape
    k_w, n = weight.shape
    assert k == k_w, "input feature dim must match weight rows"

    out_dtype = x.dtype
    x2d = x.reshape(-1, k)
    m = x2d.shape[0]

    # Opt-in bf16 MXU feed (f32 accumulation kept). Cast ONCE in the wrapper:
    # halves x/weight HBM traffic & VMEM and removes per-grid-step converts.
    if mxu_bf16:
        x2d = x2d.astype(jnp.bfloat16)
        weight = weight.astype(jnp.bfloat16)

    x_bytes = jnp.dtype(x2d.dtype).itemsize
    w_bytes = jnp.dtype(weight.dtype).itemsize
    o_bytes = jnp.dtype(out_dtype).itemsize

    # Lane-dense output: pad N up to a multiple of 128 so output stores are
    # unmasked vst; sliced back afterwards. Skipped when already aligned.
    # TODO(synk): for repeated calls with ragged N, pre-pad the parameters once
    # outside the jitted call to hoist this per-call copy off the hot path.
    n_pad = _round_up(n, 128)
    if n_pad != n:
        weight = jnp.pad(weight, ((0, 0), (0, n_pad - n)))
        bias = jnp.pad(bias, (0, n_pad - n))
    bias2d = bias.reshape(1, n_pad)
    b_bytes = jnp.dtype(bias2d.dtype).itemsize

    # --- Row (M) tile -------------------------------------------------------
    row_align = max(8, 32 // x_bytes)          # sublane packing for the dtype
    tm_cap = min(max(row_align, (tm // row_align) * row_align),
                 _round_up(m, row_align))
    # Balance the M split (e.g. 768 @ tm=512 -> 384+384 instead of 512+256);
    # helps 2-TC sharding on v7x, neutral on 1-TC chips.
    gm = pl.cdiv(m, tm_cap)
    tm_eff = min(tm_cap, _round_up(pl.cdiv(m, gm), row_align))
    # TODO(synk): on v7x additionally force an even number of parallel tiles
    # when m > tm_eff (needs a reliable TensorCore-count query).

    # --- N / K tiles, VMEM-budgeted ------------------------------------------
    n_align = 256 if n_pad % 256 == 0 else 128   # fill the 256-wide MXU on v6e/v7x
    k_align = 256 if k % 256 == 0 else 128

    vmem_budget = max(_VMEM_CAP - _VMEM_HEADROOM, 16 << 20)
    if resident_weight_bytes is None:
        resident_weight_bytes = (_VMEM_CAP * 3) // 4   # ~96 MiB on 128 MiB parts
    resident_budget = min(int(resident_weight_bytes), vmem_budget)

    def plan_need(bm, bk, bn):
        single_k = bk >= k
        resident = single_k and bn >= n_pad          # constant weight index_map
        w_bufs = 1 if (resident and _SINGLE_BUF_OK) else 2
        need = 2 * bm * bk * x_bytes                 # streamed x tiles
        need += w_bufs * bk * bn * w_bytes           # weight
        need += w_bufs * bn * b_bytes                # bias row
        need += 2 * bm * bn * o_bytes                # output tiles
        if not single_k:
            need += bm * bn * 4                      # f32 accumulator scratch
        return need, single_k, resident

    # Keep the whole weight VMEM-resident (HBM weight traffic happens once,
    # the roofline optimum for this memory-bound GEMM) when the generation-aware
    # budget allows; otherwise tile N/K and shrink until the plan fits VMEM.
    need, single_k, resident = plan_need(tm_eff, k, n_pad)
    if resident and need <= resident_budget:
        tk_eff, tn_eff = k, n_pad
    else:
        tn_req, tk_req, tm_cur = tn, tk, tm_eff
        while True:
            tn_eff = _pick_div_tile(n_pad, tn_req, n_align)
            # K that is not 128-divisible is kept whole (rare).
            tk_eff = k if (k % 128) else _pick_div_tile(k, tk_req, k_align)
            need, single_k, resident = plan_need(tm_cur, tk_eff, tn_eff)
            if need <= vmem_budget:
                break
            if tk_eff > k_align and k % 128 == 0 and tk_req > k_align:
                tk_req = max(k_align, tk_req // 2)   # shrink K first (acc holds partials)
            elif tn_eff > n_align and tn_req > n_align:
                tn_req = max(n_align, tn_req // 2)
            elif tm_cur > row_align:
                tm_cur = max(row_align, _round_up(tm_cur // 2, row_align))
            else:
                break                                 # minimal tiles; let Mosaic decide
        tm_eff = tm_cur

    vmem_limit = int(min(max(need + (16 << 20), 32 << 20), vmem_budget))

    # Scheduling hint so XLA can overlap surrounding pad/slice copies.
    cost = pl.CostEstimate(
        flops=2 * m * k * n_pad,
        transcendentals=(m * n_pad if activation is not None else 0),
        bytes_accessed=(m * k * x_bytes + k * n_pad * w_bytes
                        + m * n_pad * o_bytes + n_pad * b_bytes),
    )

    gm = pl.cdiv(m, tm_eff)
    gn = n_pad // tn_eff

    def _maybe_single_buf(block, idx, constant_index):
        if constant_index and _SINGLE_BUF_OK:
            # Constant index_map: double buffering buys nothing; halve VMEM.
            return pl.BlockSpec(block, idx, pipeline_mode=pl.Buffered(1))
        return pl.BlockSpec(block, idx)

    if single_k:
        # Fast path (single K step): no accumulator, MXU result -> epilogue -> o_ref.
        grid = (gm, gn)
        in_specs = [
            pl.BlockSpec((tm_eff, tk_eff), lambda i, j: (i, 0)),                 # x rows
            _maybe_single_buf((tk_eff, tn_eff), lambda i, j: (0, j), resident),  # weight
            _maybe_single_buf((1, tn_eff), lambda i, j: (0, j), gn == 1),        # bias
        ]
        out_specs = pl.BlockSpec((tm_eff, tn_eff), lambda i, j: (i, j))
        kernel = _make_fused_kernel(activation)
        scratch_shapes = []
        dim_sem = ("parallel", "parallel")
    else:
        grid = (gm, gn, k // tk_eff)
        in_specs = [
            pl.BlockSpec((tm_eff, tk_eff), lambda i, j, kk: (i, kk)),   # x rows
            pl.BlockSpec((tk_eff, tn_eff), lambda i, j, kk: (kk, j)),   # weight
            pl.BlockSpec((1, tn_eff), lambda i, j, kk: (0, j)),         # bias row
        ]
        out_specs = pl.BlockSpec((tm_eff, tn_eff), lambda i, j, kk: (i, j))
        kernel = _make_acc_kernel(activation)
        scratch_shapes = [pltpu.VMEM((tm_eff, tn_eff), jnp.float32)]
        dim_sem = ("parallel", "parallel", "arbitrary")

    out = pl.pallas_call(
        kernel,
        out_shape=jax.ShapeDtypeStruct((m, n_pad), out_dtype),
        grid_spec=pltpu.PrefetchScalarGridSpec(
            num_scalar_prefetch=0,
            grid=grid,
            in_specs=in_specs,
            out_specs=out_specs,
            scratch_shapes=scratch_shapes,
        ),
        compiler_params=pltpu.CompilerParams(
            dimension_semantics=dim_sem,
            vmem_limit_bytes=vmem_limit,
        ),
        cost_estimate=cost,
    )(x2d, weight, bias2d)

    if n_pad != n:
        out = out[:, :n]
    return out.reshape(*lead, n)


if __name__ == "__main__":
    # Module config: inputs=32, outputs=64, activation=None
    inputs, outputs = 32, 64
    batch, seq = 2, 8  # input tensor [..., inputs] = [2, 8, 32]

    key = jax.random.PRNGKey(0)
    kx, kw, kx2 = jax.random.split(key, 3)

    # Deterministic init mirroring nn.init.normal_(w, std=0.02) and zero bias.
    weight = 0.02 * jax.random.normal(kw, (inputs, outputs), dtype=jnp.float32)
    bias = jnp.zeros((outputs,), dtype=jnp.float32)

    # Case 1: module default (activation=None): [2, 8, 32] -> [2, 8, 64].
    # Exercises the resident-weight, single-K fast path (no accumulator).
    x = jax.random.normal(kx, (batch, seq, inputs), dtype=jnp.float32)
    y = jax.block_until_ready(dense_conv1d(x, weight, bias))
    y_ref = (x.reshape(-1, inputs) @ weight + bias).reshape(batch, seq, outputs)
    assert y.shape == (batch, seq, outputs)
    assert jnp.allclose(y, y_ref, atol=1e-5, rtol=1e-5)

    # Case 2: fused activation + ragged M (M=15, not a multiple of the row tile,
    # exercises the no-pad boundary-masked path).
    x2 = jax.random.normal(kx2, (3, 5, inputs), dtype=jnp.float32)
    y2 = jax.block_until_ready(
        dense_conv1d(x2, weight, bias, activation=jax.nn.gelu))
    y2_ref = jax.nn.gelu(
        x2.reshape(-1, inputs) @ weight + bias).reshape(3, 5, outputs)
    assert y2.shape == (3, 5, outputs)
    assert jnp.allclose(y2, y2_ref, atol=1e-4, rtol=1e-4)

    # Case 3: force the tiled-K accumulator path (tiny residency budget, K=512
    # tiled at 256) to validate the first-iteration-assign accumulator kernel.
    k3, n3 = 512, 128
    w3 = 0.02 * jax.random.normal(jax.random.PRNGKey(1), (k3, n3), jnp.float32)
    b3 = 0.1 * jax.random.normal(jax.random.PRNGKey(2), (n3,), jnp.float32)
    x3 = jax.random.normal(jax.random.PRNGKey(3), (8, k3), jnp.float32)
    y3 = jax.block_until_ready(
        dense_conv1d(x3, w3, b3, tk=256, resident_weight_bytes=1))
    y3_ref = jnp.dot(x3, w3, precision=jax.lax.Precision.HIGHEST) + b3
    assert y3.shape == (8, n3)
    assert jnp.allclose(y3, y3_ref, atol=5e-3, rtol=5e-3)

    print("KERNEL_OK")
</pallas_src>

<mosaic_0001>
module attributes {stable_mosaic.version = 11 : i64} {
  func.func @kern(%arg0: i32, %arg1: memref<8x128xf32, #tpu.memory_space<vmem>>, %arg2: memref<8x128xf32, #tpu.memory_space<vmem>>, %arg3: memref<8x128xf32, #tpu.memory_space<vmem>>) attributes {dimension_semantics = [#tpu.dimension_semantics<arbitrary>], iteration_bounds = array<i64: 2>, scalar_prefetch = 0 : i64, scratch_operands = 0 : i64, tpu.core_type = #tpu.core_type<tc>, window_params = [{transform_indices = @transform_0, window_bounds = array<i64: 8, 128>}, {pipeline_mode = #tpu.pipeline_mode<synchronous>, transform_indices = @transform_1, window_bounds = array<i64: 8, 128>}, {transform_indices = @transform_2, window_bounds = array<i64: 8, 128>}]} {
    %c0 = arith.constant 0 : index
    %c0_0 = arith.constant 0 : index
    %0 = vector.load %arg1[%c0, %c0_0] : memref<8x128xf32, #tpu.memory_space<vmem>>, vector<8x128xf32>
    %c0_1 = arith.constant 0 : index
    %c0_2 = arith.constant 0 : index
    %1 = vector.load %arg2[%c0_1, %c0_2] : memref<8x128xf32, #tpu.memory_space<vmem>>, vector<8x128xf32>
    %2 = arith.addf %0, %1 : vector<8x128xf32>
    %c0_3 = arith.constant 0 : index
    %c0_4 = arith.constant 0 : index
    %3 = vector.load %arg3[%c0_3, %c0_4] : memref<8x128xf32, #tpu.memory_space<vmem>>, vector<8x128xf32>
    tpu.vector_store %arg3[%c0_3, %c0_4], %2 {strides = array<i32>} : memref<8x128xf32, #tpu.memory_space<vmem>>, vector<8x128xf32>,
    return
  }
  func.func @transform_0(%arg0: i32) -> (i32, i32) {
    %c0_i32 = arith.constant 0 : i32
    %c0_i32_0 = arith.constant 0 : i32
    return %arg0, %c0_i32 : i32, i32
  }
  func.func @transform_1(%arg0: i32) -> (i32, i32) {
    %c0_i32 = arith.constant 0 : i32
    %c0_i32_0 = arith.constant 0 : i32
    %c0_i32_1 = arith.constant 0 : i32
    return %c0_i32, %c0_i32_0 : i32, i32
  }
  func.func @transform_2(%arg0: i32) -> (i32, i32) {
    %c0_i32 = arith.constant 0 : i32
    %c0_i32_0 = arith.constant 0 : i32
    return %arg0, %c0_i32 : i32, i32
  }
}

module attributes {stable_mosaic.version = 11 : i64} {
  func.func @kernel(%arg0: i32, %arg1: i32, %arg2: memref<16x32xf32, #tpu.memory_space<vmem>>, %arg3: memref<32x128xf32, #tpu.memory_space<vmem>>, %arg4: memref<1x128xf32, #tpu.memory_space<vmem>>, %arg5: memref<16x128xf32, #tpu.memory_space<vmem>>) attributes {dimension_semantics = [#tpu.dimension_semantics<parallel>, #tpu.dimension_semantics<parallel>], iteration_bounds = array<i64: 1, 1>, scalar_prefetch = 0 : i64, scratch_operands = 0 : i64, tpu.core_type = #tpu.core_type<tc>, window_params = [{transform_indices = @transform_0, window_bounds = array<i64: 16, 32>}, {transform_indices = @transform_1, window_bounds = array<i64: 32, 128>}, {transform_indices = @transform_2, window_bounds = array<i64: 1, 128>}, {transform_indices = @transform_3, window_bounds = array<i64: 16, 128>}]} {
    %c0 = arith.constant 0 : index
    %c0_0 = arith.constant 0 : index
    %0 = vector.load %arg2[%c0, %c0_0] : memref<16x32xf32, #tpu.memory_space<vmem>>, vector<16x32xf32>
    %c0_1 = arith.constant 0 : index
    %c0_2 = arith.constant 0 : index
    %1 = vector.load %arg3[%c0_1, %c0_2] : memref<32x128xf32, #tpu.memory_space<vmem>>, vector<32x128xf32>
    %cst = arith.constant dense<0.000000e+00> : vector<16x128xf32>
    %2 = tpu.matmul %0, %1, %cst {dimension_numbers = #tpu.dot_dimension_numbers<[1], [0], [0], [1], [0, 0, 1, 1], [], []>} : vector<16x32xf32>, vector<32x128xf32>, vector<16x128xf32> -> vector<16x128xf32>
    %c0_3 = arith.constant 0 : index
    %c0_4 = arith.constant 0 : index
    %3 = vector.load %arg4[%c0_3, %c0_4] : memref<1x128xf32, #tpu.memory_space<vmem>>, vector<1x128xf32>
    %4 = vector.broadcast %3 : vector<1x128xf32> to vector<16x128xf32>
    %5 = arith.addf %2, %4 : vector<16x128xf32>
    %c0_5 = arith.constant 0 : index
    %c0_6 = arith.constant 0 : index
    %6 = vector.load %arg5[%c0_5, %c0_6] : memref<16x128xf32, #tpu.memory_space<vmem>>, vector<16x128xf32>
    tpu.vector_store %arg5[%c0_5, %c0_6], %5 {strides = array<i32>} : memref<16x128xf32, #tpu.memory_space<vmem>>, vector<16x128xf32>,
    return
  }
  func.func @transform_0(%arg0: i32, %arg1: i32) -> (i32, i32) {
    %c0_i32 = arith.constant 0 : i32
    %c0_i32_0 = arith.constant 0 : i32
    return %arg0, %c0_i32 : i32, i32
  }
  func.func @transform_1(%arg0: i32, %arg1: i32) -> (i32, i32) {
    %c0_i32 = arith.constant 0 : i32
    %c0_i32_0 = arith.constant 0 : i32
    return %c0_i32, %arg1 : i32, i32
  }
  func.func @transform_2(%arg0: i32, %arg1: i32) -> (i32, i32) {
    %c0_i32 = arith.constant 0 : i32
    %c0_i32_0 = arith.constant 0 : i32
    return %c0_i32, %arg1 : i32, i32
  }
  func.func @transform_3(%arg0: i32, %arg1: i32) -> (i32, i32) {
    %c0_i32 = arith.constant 0 : i32
    return %arg0, %arg1 : i32, i32
  }
}

</mosaic_0001>

<llo_original>
// kernel: tpu_custom_call.1
$region0: #{tpu_custom_call.1}
  #allocation0 [shape = 'u32[]', space=smem, size = 0x4, offset = 0x4, fixed_abs, tag = 'smem constant byte address 0x4 - core index']
  #allocation1 [shape = 'u32[144,128]{1,0:T(1,128)}', space=vmem, size = 0x12000, scoped, tag = 'internal scratch']
  %s0 = inlined_call_operand.hbm [shape: f32[16,128], index: 0, kind: input, shape index: {}]
  %s1 = inlined_call_operand.hbm [shape: f32[8,128], index: 1, kind: input, shape index: {}]
  %s2 = inlined_call_operand.hbm [shape: f32[16,128], index: 2, kind: output, shape index: {}]
  %s3 = sld [smem:[#allocation0]]
  $region49: #{tpu_custom_call.1} parent=0
    _
  %s5 = ssub.s32 1, %s3
  %s6 = scalar_select 0, %s5, %s3
  $region1: #{tpu_custom_call.1} parent=0
    #allocation2 [shape = 'u8[8192]{0}', space=vmem, size = 0x2000, scoped, tag = 'input window, operand 0']
    #allocation3 [shape = 's32[2]{0}', space=sflag, size = 0x8, scoped, tag = 'scoped memory for tpu_custom_call.1']
    #allocation4 [shape = 's32[2]{0}', space=sflag, size = 0x8, scoped, tag = 'scoped memory for tpu_custom_call.1']
    #allocation5 [shape = 'u8[4096]{0}', space=vmem, size = 0x1000, scoped, tag = 'input window, operand 1, single buffered']
    #allocation6 [shape = 's32[1]{0}', space=sflag, size = 0x4, scoped, tag = 'scoped memory for tpu_custom_call.1']
    #allocation7 [shape = 'u8[8192]{0}', space=vmem, size = 0x2000, scoped, tag = 'output window, operand 0']
    %7 = vsyncpa [#allocation3], 0
    %s8 = scalar_lea.sflag [#allocation3], 1
    %9 = vsyncpa %s8, 0
    %10 = vsyncpa [#allocation6], 0
    %11 = vsyncpa [#allocation4], 0
    %s12 = scalar_lea.sflag [#allocation4], 1
    %13 = vsyncpa %s12, 0
    loop: start=0, step=1, limit=4
    $region2: #{tpu_custom_call.1} parent=1 // loop_pre_header
      _
    $region3: #{tpu_custom_call.1} parent=1 // loop_header
      %s15 = sphi 0, %s19
      %p16 = scmp.ge.s32.totalorder %s15, 4
      %s25 = sphi 0, %s27
      %s28 = sphi 0, %s25
      %s29 = sphi 0, %s28
      %s45 = sphi 0, %s29
      %s49 = sphi 0, %s49
      %s51 = sphi 0, %s49
      %s52 = sphi 0, %s51
      %s66 = sphi 0, %s52
      %s72 = sphi 0, %s74
      %s75 = sphi 0, %s72
      %s76 = sphi 0, %s75
      %s92 = sphi 0, %s76
    $region4: #{tpu_custom_call.1} parent=1 // loop_header_branch
      %18 = sbr.rel (%p16) target = $region8
    $region5: #{tpu_custom_call.1} parent=1 // loop_body
      %s20 = ssub.s32 %s15, 1
      %s21 = ssub.s32 %s15, 2
      %s22 = sadd.s32 %s15, 1
      %s23 = ssub.s32 %s15, %s22
      %p24 = scmp.eq.s32.totalorder %s23, 0
      %s26 = sadd.s32 %s25, 1
      %s27 = scalar_select %p24, %s25, %s26
      %p30 = pneg %p24
      %p31 = scmp.eq.s32.totalorder %s15, 1
      %p32 = por %p30, %p31
      %p33 = scmp.ne.s32.totalorder %s25, %s28
      %p34 = scmp.eq.s32.totalorder %s15, 0
      %p35 = por %p33, %p34
      %p36 = scmp.ne.s32.totalorder %s25, %s28
      %p37 = scmp.eq.s32.totalorder %s20, 1
      %p38 = por %p36, %p37
      %p39 = scmp.ne.s32.totalorder %s28, %s29
      %p40 = scmp.eq.s32.totalorder %s20, 0
      %p41 = por %p39, %p40
      %p42 = scmp.ne.s32.totalorder %s28, %s29
      %p43 = scmp.eq.s32.totalorder %s21, 1
      %p44 = por %p42, %p43
      %p46 = scmp.ne.s32.totalorder %s29, %s45
      %p47 = scmp.eq.s32.totalorder %s21, 0
      %p48 = por %p46, %p47
      %s50 = sadd.s32 %s49, 1
      %p53 = scmp.eq.s32.totalorder %s15, 1
      %p54 = scmp.ne.s32.totalorder %s49, %s51
      %p55 = scmp.eq.s32.totalorder %s15, 0
      %p56 = por %p54, %p55
      %p57 = scmp.ne.s32.totalorder %s49, %s51
      %p58 = scmp.eq.s32.totalorder %s20, 1
      %p59 = por %p57, %p58
      %p60 = scmp.ne.s32.totalorder %s51, %s52
      %p61 = scmp.eq.s32.totalorder %s20, 0
      %p62 = por %p60, %p61
      %p63 = scmp.ne.s32.totalorder %s51, %s52
      %p64 = scmp.eq.s32.totalorder %s21, 1
      %p65 = por %p63, %p64
      %p67 = scmp.ne.s32.totalorder %s52, %s66
      %p68 = scmp.eq.s32.totalorder %s21, 0
      %p69 = por %p67, %p68
      %s70 = ssub.s32 %s15, %s22
      %p71 = scmp.eq.s32.totalorder %s70, 0
      %s73 = sadd.s32 %s72, 1
      %s74 = scalar_select %p71, %s72, %s73
      %p77 = pneg %p71
      %p78 = scmp.eq.s32.totalorder %s15, 1
      %p79 = por %p77, %p78
      %p80 = scmp.ne.s32.totalorder %s72, %s75
      %p81 = scmp.eq.s32.totalorder %s15, 0
      %p82 = por %p80, %p81
      %p83 = scmp.ne.s32.totalorder %s72, %s75
      %p84 = scmp.eq.s32.totalorder %s20, 1
      %p85 = por %p83, %p84
      %p86 = scmp.ne.s32.totalorder %s75, %s76
      %p87 = scmp.eq.s32.totalorder %s20, 0
      %p88 = por %p86, %p87
      %p89 = scmp.ne.s32.totalorder %s75, %s76
      %p90 = scmp.eq.s32.totalorder %s21, 1
      %p91 = por %p89, %p90
      %p93 = scmp.ne.s32.totalorder %s76, %s92
      %p94 = scmp.eq.s32.totalorder %s21, 0
      %p95 = por %p93, %p94
      %p96 = scmp.le.s32.totalorder 1, %s15
      %p97 = scmp.lt.s32.totalorder %s15, 3
      %p98 = pnand %p96, %p97
      %p99 = pneg %p98
      // Predicated region
      $region9: #{tpu_custom_call.1} parent=5 // pred_check
        _
      $region10: #{tpu_custom_call.1} parent=5 // pred_check_branch
        %101 = sbr.rel (%p98) target = $region12
      $region11: #{tpu_custom_call.1} parent=5 // pred_region
        %s102 = ssub.s32 %s15, 1
        // Predicated region
        $region13: #{tpu_custom_call.1} parent=11 // pred_check
          %p103 = pneg %p62
        $region14: #{tpu_custom_call.1} parent=11 // pred_check_branch
          %105 = sbr.rel (%p103) target = $region16
        $region15: #{tpu_custom_call.1} parent=11 // pred_region
          %s107 = ssub.s32 128, 128
          %108 = vsyncadd [#allocation6], %s107
          %s110 = sshll.u32 [#allocation5], 4
          %s111 = int_to_ptr.vmem [resolvable:$true] %s110
          %113 = dma.hbm_to_vmem [thread:$0]  %s1, 128, %s111, [#allocation6]
        $region16: #{tpu_custom_call.1} parent=11 // pred_fallthru
          _
      $region12: #{tpu_custom_call.1} parent=5 // pred_fallthru
        _
      %p114 = scmp.lt.s32.totalorder %s15, 2
      // Predicated region
      $region17: #{tpu_custom_call.1} parent=5 // pred_check
        %p115 = pneg %p114
      $region18: #{tpu_custom_call.1} parent=5 // pred_check_branch
        %117 = sbr.rel (%p115) target = $region20
      $region19: #{tpu_custom_call.1} parent=5 // pred_region
        // Predicated region
        $region21: #{tpu_custom_call.1} parent=19 // pred_check
          %p118 = pneg %p35
        $region22: #{tpu_custom_call.1} parent=19 // pred_check_branch
          %120 = sbr.rel (%p118) target = $region24
        $region23: #{tpu_custom_call.1} parent=19 // pred_region
          %s121 = sand.u32 %s25, 1
          %s122 = scalar_lea.sflag [#allocation3], %s121
          %s123 = sand.u32 %s25, 1
          %s124 = smul.addr %s123, 8
          %s125 = scalar_lea.vmem [#allocation2], %s124
          %s127 = ssub.s32 128, 128
          %128 = vsyncadd %s122, %s127
          %s129 = smul.addr %s15, 128
          %s130 = scalar_lea.hbm %s0, %s129
          %s132 = sshll.u32 %s125, 4
          %s133 = int_to_ptr.vmem [resolvable:$true] %s132
          %135 = dma.hbm_to_vmem [thread:$0]  %s130, 128, %s133, %s122
        $region24: #{tpu_custom_call.1} parent=19 // pred_fallthru
          _
      $region20: #{tpu_custom_call.1} parent=5 // pred_fallthru
        _
      %p136 = scmp.le.s32.totalorder 1, %s15
      %p137 = scmp.lt.s32.totalorder %s15, 3
      %p138 = pnand %p136, %p137
      %p139 = pneg %p138
      // Predicated region
      $region25: #{tpu_custom_call.1} parent=5 // pred_check
        _
      $region26: #{tpu_custom_call.1} parent=5 // pred_check_branch
        %141 = sbr.rel (%p138) target = $region28
      $region27: #{tpu_custom_call.1} parent=5 // pred_region
        %s142 = ssub.s32 %s15, 1
        %s143 = sand.u32 %s28, 1
        %s144 = scalar_lea.sflag [#allocation3], %s143
        %s145 = sand.u32 %s28, 1
        %s146 = smul.addr %s145, 8
        %s147 = scalar_lea.vmem [#allocation2], %s146
        // Predicated region
        $region29: #{tpu_custom_call.1} parent=27 // pred_check
          %p148 = pneg %p41
        $region30: #{tpu_custom_call.1} parent=27 // pred_check_branch
          %150 = sbr.rel (%p148) target = $region32
        $region31: #{tpu_custom_call.1} parent=27 // pred_region
          %151 = dma.done %s144, 128
        $region32: #{tpu_custom_call.1} parent=27 // pred_fallthru
          _
        // Predicated region
        $region33: #{tpu_custom_call.1} parent=27 // pred_check
          %p152 = pneg %p62
        $region34: #{tpu_custom_call.1} parent=27 // pred_check_branch
          %154 = sbr.rel (%p152) target = $region36
        $region35: #{tpu_custom_call.1} parent=27 // pred_region
          %155 = dma.done [#allocation6], 128
        $region36: #{tpu_custom_call.1} parent=27 // pred_fallthru
          _
        %s156 = sand.u32 %s28, 1
        %s157 = scalar_lea.sflag [#allocation3], %s156
        %s158 = sand.u32 %s28, 1
        %s159 = smul.addr %s158, 8
        %s160 = scalar_lea.vmem [#allocation2], %s159
        %p161 = pneg %p41
        %p162 = pneg %p38
        %p163 = pneg %p62
        %p164 = pneg %p59
        %p165 = pneg %p88
        %p166 = pneg %p85
        %s167 = sand.u32 %s75, 1
        %s168 = scalar_lea.sflag [#allocation4], %s167
        %s169 = sand.u32 %s75, 1
        %s170 = smul.addr %s169, 8
        %s171 = scalar_lea.vmem [#allocation7], %s170
        %v172 = vld [vmem:[%s147] sm:$0xff]
        %v173 = vld [vmem:[#allocation5] sm:$0xff]
        %v174 = vadd.f32 %v172, %v173
        %175 = vst [vmem:[%s171] sm:$0xff] %v174
        %s176 = sand.u32 %s75, 1
        %s177 = scalar_lea.sflag [#allocation4], %s176
        %s178 = sand.u32 %s75, 1
        %s179 = smul.addr %s178, 8
        %s180 = scalar_lea.vmem [#allocation7], %s179
        // Predicated region
        $region37: #{tpu_custom_call.1} parent=27 // pred_check
          %p181 = pneg %p85
        $region38: #{tpu_custom_call.1} parent=27 // pred_check_branch
          %183 = sbr.rel (%p181) target = $region40
        $region39: #{tpu_custom_call.1} parent=27 // pred_region
          %s185 = ssub.s32 128, 128
          %186 = vsyncadd %s177, %s185
          %s187 = smul.addr %s20, 128
          %s188 = scalar_lea.hbm %s2, %s187
          %s190 = sshll.u32 %s180, 4
          %s191 = int_to_ptr.vmem [resolvable:$true] %s190
          %193 = dma.vmem_to_hbm [thread:$0]  %s191, 128, %s188, %s177
        $region40: #{tpu_custom_call.1} parent=27 // pred_fallthru
          _
      $region28: #{tpu_custom_call.1} parent=5 // pred_fallthru
        _
      %p194 = scmp.le.s32.totalorder 2, %s15
      // Predicated region
      $region41: #{tpu_custom_call.1} parent=5 // pred_check
        %p195 = pneg %p194
      $region42: #{tpu_custom_call.1} parent=5 // pred_check_branch
        %197 = sbr.rel (%p195) target = $region44
      $region43: #{tpu_custom_call.1} parent=5 // pred_region
        %s198 = ssub.s32 %s15, 2
        // Predicated region
        $region45: #{tpu_custom_call.1} parent=43 // pred_check
          %p199 = pneg %p91
        $region46: #{tpu_custom_call.1} parent=43 // pred_check_branch
          %201 = sbr.rel (%p199) target = $region48
        $region47: #{tpu_custom_call.1} parent=43 // pred_region
          %s202 = sand.u32 %s76, 1
          %s203 = scalar_lea.sflag [#allocation4], %s202
          %s204 = sand.u32 %s76, 1
          %s205 = smul.addr %s204, 8
          %s206 = scalar_lea.vmem [#allocation7], %s205
          %207 = dma.done %s203, 128
        $region48: #{tpu_custom_call.1} parent=43 // pred_fallthru
          _
      $region44: #{tpu_custom_call.1} parent=5 // pred_fallthru
        _
    $region6: #{tpu_custom_call.1} parent=1 // loop_footer
      %s19 = sadd.s32 1, %s15
    $region7: #{tpu_custom_call.1} parent=1 // loop_footer_branch
      %14 = sbr.rel target = $region3
    $region8: #{tpu_custom_call.1} parent=1 // loop_exit
      _
    %208 = vsyncpa [#allocation3], 1
    %s209 = scalar_lea.sflag [#allocation3], 1
    %210 = vsyncpa %s209, 1
    %211 = vsyncpa [#allocation6], 1
    %212 = vsyncpa [#allocation4], 1
    %s213 = scalar_lea.sflag [#allocation4], 1
    %214 = vsyncpa %s213, 1

// kernel: dense_conv1d.1
$region0: #{dense_conv1d.1}
  #allocation0 [shape = 'u32[]', space=smem, size = 0x4, offset = 0x4, fixed_abs, tag = 'smem constant byte address 0x4 - core index']
  #allocation1 [shape = 'u32[144,128]{1,0:T(1,128)}', space=vmem, size = 0x12000, scoped, tag = 'internal scratch']
  %s0 = inlined_call_operand.vmem [shape: f32[16,32], index: 0, kind: input, shape index: {}]
  %s1 = inlined_call_operand.vmem [shape: f32[32,128], index: 1, kind: input, shape index: {}]
  %s2 = inlined_call_operand.vmem [shape: f32[1,128], index: 2, kind: input, shape index: {}]
  %s3 = inlined_call_operand.vmem [shape: f32[16,128], index: 3, kind: output, shape index: {}]
  %s4 = sld [smem:[#allocation0]]
  $region22: #{dense_conv1d.1} parent=0
    _
  %s6 = ssub.s32 1, %s4
  %s7 = scalar_select 0, %s6, %s4
  // Predicated region
  $region2: #{dense_conv1d.1} parent=0 // pred_check
    _
  $region3: #{dense_conv1d.1} parent=0 // pred_check_branch
    %9 = sbr.rel (0) target = $region5
  $region4: #{dense_conv1d.1} parent=0 // pred_region
    _
  $region5: #{dense_conv1d.1} parent=0 // pred_fallthru
    _
  // Predicated region
  $region6: #{dense_conv1d.1} parent=0 // pred_check
    _
  $region7: #{dense_conv1d.1} parent=0 // pred_check_branch
    %11 = sbr.rel (0) target = $region9
  $region8: #{dense_conv1d.1} parent=0 // pred_region
    _
  $region9: #{dense_conv1d.1} parent=0 // pred_fallthru
    _
  // Predicated region
  $region10: #{dense_conv1d.1} parent=0 // pred_check
    _
  $region11: #{dense_conv1d.1} parent=0 // pred_check_branch
    %13 = sbr.rel (0) target = $region13
  $region12: #{dense_conv1d.1} parent=0 // pred_region
    _
  $region13: #{dense_conv1d.1} parent=0 // pred_fallthru
    _
  %v14 = vld [vmem:[%s0] sm:$0xff]
  %v15 = vld [vmem:[%s0 + $0x8] sm:$0xff]
  %v16 = vld [vmem:[%s1] sm:$0xff]
  %v17 = vld [vmem:[%s1 + $0x8] sm:$0xff]
  %v18 = vld [vmem:[%s1 + $0x10] sm:$0xff]
  %v19 = vld [vmem:[%s1 + $0x18] sm:$0xff]
  %v20 = vld [vmem:[%s2] sm:$0x1]
  %v22 = vlaneseq
  %v23 = vshrl.u32 %v22, 7
  %v24 = vsub.s32 0, %v23
  %v25 = vrot.slane %v20, %v24
  %vm27 = vcmask 261120
  %v29 = vsel %vm27, %v14, 0
  %v32 = vsel %vm27, %v15, 0
  %34 = vmatprep.subr.mxu0 0.0
  %35 = vmatpush1.msra.mxu0 0.0
  %36 = vmatprep.subr.mxu0 0.0
  %37 = vmatpush1.msra.mxu0 0.0
  %38 = vmatprep.subr.mxu0 0.0
  %39 = vmatpush1.msra.mxu0 0.0
  %40 = vmatprep.subr.mxu0 0.0
  %41 = vmatpush1.msra.mxu0 0.0
  %42 = vmatprep.subr.mxu0 0.0
  %43 = vmatpush1.msra.mxu0 0.0
  %44 = vmatprep.subr.mxu0 0.0
  %45 = vmatpush1.msra.mxu0 0.0
  %46 = vmatprep.subr.mxu0 0.0
  %47 = vmatpush1.msra.mxu0 0.0
  %48 = vmatprep.subr.mxu0 0.0
  %49 = vmatpush1.msra.mxu0 0.0
  %50 = vmatprep.subr.mxu0 0.0
  %51 = vmatpush1.msra.mxu0 0.0
  %52 = vmatprep.subr.mxu0 0.0
  %53 = vmatpush1.msra.mxu0 0.0
  %54 = vmatprep.subr.mxu0 0.0
  %55 = vmatpush1.msra.mxu0 0.0
  %56 = vmatprep.subr.mxu0 0.0
  %57 = vmatpush1.msra.mxu0 0.0
  %58 = vmatprep.subr.mxu0 0.0
  %59 = vmatpush1.msra.mxu0 %v19
  %60 = vmatprep.subr.mxu0 0.0
  %61 = vmatpush1.msra.mxu0 %v18
  %62 = vmatprep.subr.mxu0 0.0
  %63 = vmatpush1.msra.mxu0 %v17
  %64 = vmatprep.subr.mxu0 0.0
  %65 = vmatpush1.msra.mxu0 %v16
  %66 = vmatprep.subr.mxu0 0.0
  %67 = vmatpush2.msra.mxu0 0.0
  %68 = vmatprep.subr.mxu0 0.0
  %69 = vmatpush2.msra.mxu0 0.0
  %70 = vmatprep.subr.mxu0 0.0
  %71 = vmatpush2.msra.mxu0 0.0
  %72 = vmatprep.subr.mxu0 0.0
  %73 = vmatpush2.msra.mxu0 0.0
  %74 = vmatprep.subr.mxu0 0.0
  %75 = vmatpush2.msra.mxu0 0.0
  %76 = vmatprep.subr.mxu0 0.0
  %77 = vmatpush2.msra.mxu0 0.0
  %78 = vmatprep.subr.mxu0 0.0
  %79 = vmatpush2.msra.mxu0 0.0
  %80 = vmatprep.subr.mxu0 0.0
  %81 = vmatpush2.msra.mxu0 0.0
  %82 = vmatprep.subr.mxu0 0.0
  %83 = vmatpush2.msra.mxu0 0.0
  %84 = vmatprep.subr.mxu0 0.0
  %85 = vmatpush2.msra.mxu0 0.0
  %86 = vmatprep.subr.mxu0 0.0
  %87 = vmatpush2.msra.mxu0 0.0
  %88 = vmatprep.subr.mxu0 0.0
  %89 = vmatpush2.msra.mxu0 0.0
  %90 = vmatprep.subr.mxu0 0.0
  %91 = vmatpush2.msra.mxu0 0.0
  %92 = vmatprep.subr.mxu0 0.0
  %93 = vmatpush2.msra.mxu0 0.0
  %94 = vmatprep.subr.mxu0 0.0
  %95 = vmatpush2.msra.mxu0 0.0
  %96 = vmatprep.subr.mxu0 0.0
  %97 = vmatpush2.msra.mxu0 0.0
  %98 = vmatprep.mubr.f32.mxu0 0.0
  %99 = vmatmul.mubr.f32.gmra.mxu0 %v29
  %v100 = vpop.f32.mrf.mxu0
  %v101 = vadd.f32 %v25, %v100
  %v102 = vpop.f32.mrf.mxu0
  %103 = vmatprep.mubr.f32.mxu0 0.0
  %104 = vmatmul.mubr.f32.gmra.mxu0 %v32
  %v105 = vpop.f32.mrf.mxu0
  %v106 = vadd.f32 %v25, %v105
  %v107 = vpop.f32.mrf.mxu0
  %108 = vdwg.mxu0
  %109 = vst [vmem:[%s3] sm:$0xff] %v101
  %110 = vst [vmem:[%s3 + $0x8] sm:$0xff] %v106
  // Predicated region
  $region14: #{dense_conv1d.1} parent=0 // pred_check
    _
  $region15: #{dense_conv1d.1} parent=0 // pred_check_branch
    %112 = sbr.rel (0) target = $region17
  $region16: #{dense_conv1d.1} parent=0 // pred_region
    _
  $region17: #{dense_conv1d.1} parent=0 // pred_fallthru
    _
  // Predicated region
  $region18: #{dense_conv1d.1} parent=0 // pred_check
    _
  $region19: #{dense_conv1d.1} parent=0 // pred_check_branch
    %114 = sbr.rel (0) target = $region21
  $region20: #{dense_conv1d.1} parent=0 // pred_region
    _
  $region21: #{dense_conv1d.1} parent=0 // pred_fallthru
    _

</llo_original>
